<compile_context>
chip_gen: v7x
topology: tpu7x:2x2x1
jax: 0.10.0
libtpu: 0.0.40
codegen_flags: <defaults>
</compile_context>

<pallas_src>
import random

import numpy as np
import jax
import jax.numpy as jnp
from jax import lax
from jax.experimental import pallas as pl
from jax.experimental.pallas import tpu as pltpu

IMAGENET_MEAN = (0.485, 0.456, 0.406)
IMAGENET_STD = (0.229, 0.224, 0.225)
PAD_VALUE = 114.0  # raw-pixel letterbox pad value used by resize_image


def _round_up(x, m):
    return ((x + m - 1) // m) * m


def _ceil_div(a, b):
    return -(-a // b)


def _bilinear_matrix(n_out_valid, n_out_total, src_start, src_size, n_in_total,
                     reverse=False):
    """(n_out_total, n_in_total) bilinear sampling matrix.

    Output index i < n_out_valid samples source position
    src_start + clip((i + .5) * src_size / n_out_valid - .5, 0, src_size - 1),
    optionally mirrored inside the source window (horizontal flip).  Rows
    >= n_out_valid are zero, so the matmul yields exact zeros in the pad
    region (the kernel adds the pad value there)."""
    m = np.zeros((n_out_total, n_in_total), dtype=np.float32)
    if n_out_valid <= 0:
        return m
    i = np.arange(n_out_valid, dtype=np.float64)
    src = (i + 0.5) * (src_size / float(n_out_valid)) - 0.5
    src = np.clip(src, 0.0, src_size - 1.0)
    i0 = np.floor(src).astype(np.int64)
    i1 = np.minimum(i0 + 1, src_size - 1)
    w1 = (src - i0).astype(np.float32)
    w0 = (1.0 - w1).astype(np.float32)
    if reverse:  # fold the horizontal flip into the column mapping
        i0 = src_size - 1 - i0
        i1 = src_size - 1 - i1
    rows = np.arange(n_out_valid)
    m[rows, src_start + i0] += w0
    m[rows, src_start + i1] += w1
    return m


def _choose_row_tiling(out_h):
    """Returns (tile_oh, n_split, tiles_per_split)."""
    out_h8 = _round_up(max(int(out_h), 1), 8)
    if out_h8 <= 256:
        return out_h8, 1, 1
    # Prefer M=256 row tiles (v6e/v7x MXU is 256 wide) when padding waste <10%.
    if (_round_up(out_h8, 256) - out_h8) / out_h8 < 0.10:
        tile_oh = 256
    else:
        tile_oh = 128
    n_tiles = _ceil_div(out_h8, tile_oh)
    # v7x megacore balance: leading size-2 parallel axis halves the row-tile
    # range per core.  Only split when the phantom-tile overhead is small so
    # single-TC chips (v5e/v6e) are not penalised.
    n_split = 2 if (n_tiles % 2 == 0 or n_tiles >= 5) else 1
    tiles_per_split = _ceil_div(n_tiles, n_split)
    return tile_oh, n_split, tiles_per_split


def _make_kernel(*, width_first, tile_oh, tiles_per_split, new_h):
    """Kernel factory; trace-time constants are baked in as immediates."""

    def _to_bf16(x):
        # In-kernel decode of the raw image (no wrapper-side pad/cast pass).
        # uint8 goes through a free bitcast to int8 (signed converts are the
        # well-supported path) and the two's-complement offset is undone.
        if x.dtype == jnp.uint8:
            xi = pltpu.bitcast(x, jnp.int8).astype(jnp.float32)
            x = jnp.where(xi < 0.0, xi + 256.0, xi)
        return x.astype(jnp.bfloat16)

    def kernel(scale_ref, bias_ref,            # scalar prefetch (SMEM, f32[C])
               img_ref, rh_ref, rwt_ref, colpad_ref,   # inputs (VMEM)
               out_ref,                        # output row tile (VMEM)
               cache_ref):                     # persistent bf16 scratch
        s = pl.program_id(0)          # megacore split
        c = pl.program_id(1)          # channel
        t = pl.program_id(2)          # row tile within this split

        # Once per (core, channel): decode the image and, in width-first order,
        # run the width pass into the persistent cache.
        @pl.when(t == 0)
        def _():
            x = _to_bf16(img_ref[...])                        # (H, W) bf16
            if width_first:
                cache_ref[...] = jnp.dot(
                    x, rwt_ref[...],
                    preferred_element_type=jnp.float32).astype(jnp.bfloat16)
            else:
                cache_ref[...] = x

        row_off = pl.multiple_of((s * tiles_per_split + t) * tile_oh, tile_oh)
        rh_tile = rh_ref[pl.ds(row_off, tile_oh), :]           # (tile_oh, H)

        if width_first:
            resized = jnp.dot(rh_tile, cache_ref[...],
                              preferred_element_type=jnp.float32)
        else:
            tmp = jnp.dot(rh_tile, cache_ref[...],
                          preferred_element_type=jnp.float32)  # (tile_oh, W)
            resized = jnp.dot(tmp.astype(jnp.bfloat16), rwt_ref[...],
                              preferred_element_type=jnp.float32)

        # Cheap pad epilogue: `resized` is exactly zero outside the valid
        # region (zero matrix rows/cols), so adding PAD there and applying the
        # folded affine gives the letterbox value.  Only a (tile_oh, 1) iota
        # plus a resident (1, out_w_pad) column vector are needed.
        rows = row_off + lax.broadcasted_iota(jnp.int32, (tile_oh, 1), 0)
        row_pad = jnp.where(rows < new_h, 0.0, PAD_VALUE)
        pad_add = jnp.maximum(row_pad, colpad_ref[...])
        out_ref[...] = ((resized + pad_add) * scale_ref[c]
                        + bias_ref[c]).astype(out_ref.dtype)

    return kernel


def _resample_image(image_chw, *, out_h, out_w, new_h, new_w,
                    src_y0=0, src_h=None, src_x0=0, src_w=None,
                    hflip=False, normalize=True, out_dtype=jnp.float32):
    """Fused crop/flip/resize/pad/normalize on TPU.  Returns (C, out_h, out_w)."""
    image_chw = jnp.asarray(image_chw)
    C, H, W = image_chw.shape
    src_h = H if src_h is None else int(src_h)
    src_w = W if src_w is None else int(src_w)
    out_h, out_w, new_h, new_w = int(out_h), int(out_w), int(new_h), int(new_w)

    out_w_pad = _round_up(max(out_w, 1), 128)       # lane-dense output stores
    tile_oh, n_split, tiles_per_split = _choose_row_tiling(out_h)
    out_h_total = n_split * tiles_per_split * tile_oh

    # Host-built interpolation matrices with the true input extents (no image
    # padding pass); width matrix pre-transposed -> no in-kernel relayout.
    rh = jnp.asarray(
        _bilinear_matrix(new_h, out_h_total, src_y0, src_h, H), jnp.bfloat16)
    rwt = jnp.asarray(
        _bilinear_matrix(new_w, out_w_pad, src_x0, src_w, W, reverse=hflip).T,
        jnp.bfloat16)
    col_pad = jnp.asarray(
        np.where(np.arange(out_w_pad) < new_w, 0.0, PAD_VALUE)
        .astype(np.float32)[None, :])

    if normalize:
        assert C == 3, "ImageNet normalization expects 3 channels"
        mean = np.asarray(IMAGENET_MEAN, np.float32)
        std = np.asarray(IMAGENET_STD, np.float32)
        scale_c = (1.0 / (255.0 * std)).astype(np.float32)   # folded to_tensor
        bias_c = (-mean / std).astype(np.float32)
    else:
        scale_c = np.ones((C,), np.float32)
        bias_c = np.zeros((C,), np.float32)

    # Pass order by MAC count (per channel, per core).
    macs_wf = H * W * out_w_pad + out_h_total * H * out_w_pad
    macs_hf = out_h_total * H * W + out_h_total * W * out_w_pad
    width_first = macs_wf <= macs_hf
    cache_shape = (H, out_w_pad) if width_first else (H, W)

    kernel = _make_kernel(width_first=width_first, tile_oh=tile_oh,
                          tiles_per_split=tiles_per_split, new_h=new_h)

    def call(img_dev, single_buffer):
        img_itemsize = np.dtype(img_dev.dtype).itemsize
        out_itemsize = np.dtype(out_dtype).itemsize
        resident_mult = 1 if single_buffer else 2
        working_set = (
            H * W * img_itemsize * 2                       # image block (x2 buf)
            + out_h_total * H * 2 * resident_mult          # rh (resident)
            + W * out_w_pad * 2 * resident_mult            # rwt (resident)
            + out_w_pad * 4 * resident_mult                # column pad vector
            + tile_oh * out_w_pad * out_itemsize * 2       # output block (x2)
            + int(np.prod(cache_shape)) * 2)               # persistent scratch
        assert working_set <= 40 * 1024 * 1024, (
            "input too large for channel-resident tiling (%d bytes); "
            "K-tile the contraction for camera-resolution inputs" % working_set)
        vmem_limit = min(96 * 1024 * 1024,
                         16 * 1024 * 1024 + int(1.5 * working_set))

        resident_kw = (dict(pipeline_mode=pl.Buffered(1))
                       if single_buffer else {})

        grid_spec = pltpu.PrefetchScalarGridSpec(
            num_scalar_prefetch=2,
            grid=(n_split, C, tiles_per_split),
            in_specs=[
                # raw image: one full channel resident per (core, channel)
                pl.BlockSpec((None, H, W), lambda s, c, t, *_: (c, 0, 0)),
                # height matrix: fully resident, sliced in-kernel with pl.ds
                pl.BlockSpec((out_h_total, H), lambda s, c, t, *_: (0, 0),
                             **resident_kw),
                # pre-transposed width matrix: resident
                pl.BlockSpec((W, out_w_pad), lambda s, c, t, *_: (0, 0),
                             **resident_kw),
                # column pad vector: resident
                pl.BlockSpec((1, out_w_pad), lambda s, c, t, *_: (0, 0),
                             **resident_kw),
            ],
            out_specs=pl.BlockSpec(
                (None, tile_oh, out_w_pad),
                lambda s, c, t, *_: (c, s * tiles_per_split + t, 0)),
            scratch_shapes=[pltpu.VMEM(cache_shape, jnp.bfloat16)],
        )
        out = pl.pallas_call(
            kernel,
            out_shape=jax.ShapeDtypeStruct((C, out_h_total, out_w_pad),
                                           out_dtype),
            grid_spec=grid_spec,
            compiler_params=pltpu.CompilerParams(
                dimension_semantics=("parallel", "arbitrary", "arbitrary"),
                vmem_limit_bytes=vmem_limit),
        )(jnp.asarray(scale_c), jnp.asarray(bias_c), img_dev, rh, rwt, col_pad)
        return jax.block_until_ready(out)

    try:
        padded = call(image_chw, single_buffer=True)
    except Exception:
        # Defensive fallback: if the aggressive config (in-kernel uint8 decode +
        # single-buffered resident blocks) fails to lower on this toolchain,
        # retry with float32 input and default double buffering.
        padded = call(image_chw.astype(jnp.float32), single_buffer=False)

    return padded[:, :out_h, :out_w]


# ---------------------------------------------------------------------------
# Module-level wrappers
# ---------------------------------------------------------------------------
def _sample_crop_and_flip(rng, width, height, min_size_ratio=0.5,
                          horizontal_flip_p=0.5):
    """Host-side parameter sampling, mirroring _random_crop / forward()."""
    ratio = rng.uniform(min_size_ratio, 1.0)
    new_width = int(ratio * width)
    new_height = int(ratio * height)
    offset_x = rng.randrange(0, max(1, width - new_width))
    offset_y = rng.randrange(0, max(1, height - new_height))
    flip = rng.random() < horizontal_flip_p
    return offset_x, offset_y, new_width, new_height, flip


def before_mosaic_detection_training_transform(image_chw, bboxes, *, rng=None,
                                               horizontal_flip_p=0.5):
    """Pallas-backed BeforeMosaicDetectionTrainingTransform.forward.

    image_chw: (3, H, W) uint8 (or float) raw pixels; bboxes: (N, 4) xyxy.
    Returns (cropped/flipped image, float32 raw pixels; transformed bboxes).
    """
    # TODO(synk): host-side stochastic photometric PIL transforms are skipped.
    if rng is None:
        rng = random.Random()
    image_chw = jnp.asarray(image_chw)
    C, H, W = image_chw.shape
    ox, oy, cw, ch, flip = _sample_crop_and_flip(
        rng, W, H, horizontal_flip_p=horizontal_flip_p)

    # Crop + optional hflip of the image, done on-device through the shared
    # kernel (identity resample of the crop window -> bit-exact for uint8).
    cropped = _resample_image(image_chw, out_h=ch, out_w=cw, new_h=ch, new_w=cw,
                              src_y0=oy, src_h=ch, src_x0=ox, src_w=cw,
                              hflip=flip, normalize=False)

    # bbox bookkeeping mirrors _random_crop / _horizontal_flip (host glue).
    b = np.asarray(bboxes, np.float32).copy()
    b[:, 0] -= ox
    b[:, 2] -= ox
    b[:, 1] -= oy
    b[:, 3] -= oy
    inside = ~(((b[:, 0] < 0.0) & (b[:, 2] < 0.0))
               | ((b[:, 0] > cw) & (b[:, 2] > cw))
               | ((b[:, 1] < 0.0) & (b[:, 3] < 0.0))
               | ((b[:, 1] > ch) & (b[:, 3] > ch)))
    b = b[inside]
    b[:, 0] = np.clip(b[:, 0], 0.0, None)
    b[:, 1] = np.clip(b[:, 1], 0.0, None)
    b[:, 2] = np.clip(b[:, 2], None, float(cw))
    b[:, 3] = np.clip(b[:, 3], None, float(ch))
    if flip:
        b = np.stack([cw - b[:, 2], b[:, 1], cw - b[:, 0], b[:, 3]], axis=1)
    return cropped, jnp.asarray(b)


def detection_resize_pad_normalize(image_chw, image_size, bboxes=None,
                                   out_dtype=jnp.float32):
    """Previously reviewed hot path: aspect-preserving bilinear resize +
    letterbox pad (114) + to_tensor/normalize, fused in the same kernel."""
    image_chw = jnp.asarray(image_chw)
    C, H, W = image_chw.shape
    out_h, out_w = int(image_size[0]), int(image_size[1])
    scale = min(out_h / H, out_w / W)
    new_h, new_w = int(H * scale), int(W * scale)
    normalized = _resample_image(image_chw, out_h=out_h, out_w=out_w,
                                 new_h=new_h, new_w=new_w,
                                 src_y0=0, src_h=H, src_x0=0, src_w=W,
                                 hflip=False, normalize=True,
                                 out_dtype=out_dtype)
    if bboxes is None:
        return normalized, scale
    return normalized, jnp.asarray(bboxes) * scale


# ---------------------------------------------------------------------------
# Pure-numpy references for the demo checks
# ---------------------------------------------------------------------------
def _reference_resize_bilinear(img_f32, new_h, new_w):
    C, H, W = img_f32.shape

    def taps(n_out, n_in):
        s = (np.arange(n_out, dtype=np.float64) + 0.5) * (n_in / n_out) - 0.5
        s = np.clip(s, 0.0, n_in - 1.0)
        i0 = np.floor(s).astype(np.int64)
        i1 = np.minimum(i0 + 1, n_in - 1)
        return i0, i1, (s - i0).astype(np.float32)

    y0, y1, wy = taps(new_h, H)
    x0, x1, wx = taps(new_w, W)
    top = img_f32[:, y0][:, :, x0] * (1 - wx) + img_f32[:, y0][:, :, x1] * wx
    bot = img_f32[:, y1][:, :, x0] * (1 - wx) + img_f32[:, y1][:, :, x1] * wx
    return top * (1 - wy)[None, :, None] + bot * wy[None, :, None]


if __name__ == "__main__":
    key = jax.random.PRNGKey(0)
    k_img, k_box = jax.random.split(key)

    # small synthetic uint8 image (3, 16, 48), raw pixel values in [0, 255]
    H, W = 16, 48
    image = jax.random.randint(k_img, (3, H, W), 0, 256,
                               dtype=jnp.int32).astype(jnp.uint8)

    xy = jax.random.uniform(k_box, (5, 2), jnp.float32, 0.0, 24.0)
    wh = jax.random.uniform(jax.random.fold_in(k_box, 1), (5, 2),
                            jnp.float32, 2.0, 16.0)
    bboxes = jnp.concatenate([xy, xy + wh], axis=1)            # (5, 4) xyxy

    # --- training transform (the module's forward: crop + flip + bboxes) ----
    crop_img, crop_boxes = before_mosaic_detection_training_transform(
        image, bboxes, rng=random.Random(0))
    jax.block_until_ready(crop_img)

    ox, oy, cw, ch, flip = _sample_crop_and_flip(random.Random(0), W, H)
    ref_crop = np.asarray(image, np.float32)[:, oy:oy + ch, ox:ox + cw]
    if flip:
        ref_crop = ref_crop[:, :, ::-1]
    assert crop_img.shape == (3, ch, cw)
    np.testing.assert_allclose(np.asarray(crop_img), ref_crop, atol=1e-3)
    assert crop_boxes.ndim == 2 and crop_boxes.shape[1] == 4

    # --- resize + pad + normalize hot path (previously reviewed kernel) -----
    image_size = (32, 32)
    norm, scale = detection_resize_pad_normalize(image, image_size)
    jax.block_until_ready(norm)
    assert norm.shape == (3, image_size[0], image_size[1])
    assert norm.dtype == jnp.float32

    new_h, new_w = int(H * scale), int(W * scale)
    resized_ref = _reference_resize_bilinear(np.asarray(image, np.float32),
                                             new_h, new_w)
    canvas = np.full((3, image_size[0], image_size[1]), PAD_VALUE, np.float32)
    canvas[:, :new_h, :new_w] = resized_ref
    mean = np.asarray(IMAGENET_MEAN, np.float32)[:, None, None]
    std = np.asarray(IMAGENET_STD, np.float32)[:, None, None]
    ref_norm = (canvas / 255.0 - mean) / std
    np.testing.assert_allclose(np.asarray(norm), ref_norm, atol=0.1, rtol=0)

    print("KERNEL_OK")
</pallas_src>

<mosaic_0001>
module attributes {stable_mosaic.version = 11 : i64} {
  func.func @kernel(%arg0: i32, %arg1: i32, %arg2: i32, %arg3: memref<3xf32, #tpu.memory_space<smem>>, %arg4: memref<3xf32, #tpu.memory_space<smem>>, %arg5: memref<1x16x48xi8, #tpu.memory_space<vmem>>, %arg6: memref<16x16xbf16, #tpu.memory_space<vmem>>, %arg7: memref<48x128xbf16, #tpu.memory_space<vmem>>, %arg8: memref<1x128xf32, #tpu.memory_space<vmem>>, %arg9: memref<1x16x128xf32, #tpu.memory_space<vmem>>, %arg10: memref<16x48xbf16, #tpu.memory_space<vmem>>) attributes {dimension_semantics = [#tpu.dimension_semantics<parallel>, #tpu.dimension_semantics<arbitrary>, #tpu.dimension_semantics<arbitrary>], iteration_bounds = array<i64: 1, 3, 1>, scalar_prefetch = 2 : i64, scratch_operands = 1 : i64, tpu.core_type = #tpu.core_type<tc>, window_params = [{transform_indices = @transform_0, window_bounds = array<i64: 1, 16, 48>}, {pipeline_mode = #tpu.pipeline_mode<synchronous>, transform_indices = @transform_1, window_bounds = array<i64: 16, 16>}, {pipeline_mode = #tpu.pipeline_mode<synchronous>, transform_indices = @transform_2, window_bounds = array<i64: 48, 128>}, {pipeline_mode = #tpu.pipeline_mode<synchronous>, transform_indices = @transform_3, window_bounds = array<i64: 1, 128>}, {transform_indices = @transform_4, window_bounds = array<i64: 1, 16, 128>}]} {
    %c0_i32 = arith.constant 0 : i32
    %0 = arith.cmpi eq, %arg2, %c0_i32 : i32
    %1 = arith.extui %0 : i1 to i32
    %c0_i32_0 = arith.constant 0 : i32
    %2 = arith.cmpi ne, %1, %c0_i32_0 : i32
    scf.if %2 {
      %c0_13 = arith.constant 0 : index
      %c0_14 = arith.constant 0 : index
      %c0_15 = arith.constant 0 : index
      %38 = vector.load %arg5[%c0_13, %c0_14, %c0_15] : memref<1x16x48xi8, #tpu.memory_space<vmem>>, vector<1x16x48xi8>
      %39 = vector.shape_cast %38 : vector<1x16x48xi8> to vector<16x48xi8>
      %40 = tpu.bitcast %39 : vector<16x48xi8> -> vector<16x48xi8>
      %41 = arith.sitofp %40 : vector<16x48xi8> to vector<16x48xf32>
      %cst_16 = arith.constant 0.000000e+00 : f32
      %42 = vector.broadcast %cst_16 : f32 to vector<16x48xf32>
      %43 = arith.cmpf olt, %41, %42 : vector<16x48xf32>
      %cst_17 = arith.constant 2.560000e+02 : f32
      %44 = vector.broadcast %cst_17 : f32 to vector<16x48xf32>
      %45 = arith.addf %41, %44 : vector<16x48xf32>
      %46 = arith.select %43, %45, %41 : vector<16x48xi1>, vector<16x48xf32>
      %47 = arith.truncf %46 : vector<16x48xf32> to vector<16x48xbf16>
      %c0_18 = arith.constant 0 : index
      %c0_19 = arith.constant 0 : index
      %48 = vector.load %arg10[%c0_18, %c0_19] : memref<16x48xbf16, #tpu.memory_space<vmem>>, vector<16x48xbf16>
      tpu.vector_store %arg10[%c0_18, %c0_19], %47 {strides = array<i32>} : memref<16x48xbf16, #tpu.memory_space<vmem>>, vector<16x48xbf16>,
    } else {
    }
    %c1_i32 = arith.constant 1 : i32
    %3 = arith.muli %arg0, %c1_i32 : i32
    %4 = arith.addi %3, %arg2 : i32
    %c16_i32 = arith.constant 16 : i32
    %5 = arith.muli %4, %c16_i32 : i32
    %6 = tpu.assume_multiple %5, 16 : i32
    %7 = arith.index_cast %6 : i32 to index
    %c0 = arith.constant 0 : index
    %8 = vector.load %arg6[%7, %c0] : memref<16x16xbf16, #tpu.memory_space<vmem>>, vector<16x16xbf16>
    %c0_1 = arith.constant 0 : index
    %c0_2 = arith.constant 0 : index
    %9 = vector.load %arg10[%c0_1, %c0_2] : memref<16x48xbf16, #tpu.memory_space<vmem>>, vector<16x48xbf16>
    %cst = arith.constant dense<0.000000e+00> : vector<16x48xf32>
    %10 = tpu.matmul %8, %9, %cst {dimension_numbers = #tpu.dot_dimension_numbers<[1], [0], [0], [1], [0, 0, 1, 1], [], []>} : vector<16x16xbf16>, vector<16x48xbf16>, vector<16x48xf32> -> vector<16x48xf32>
    %11 = arith.truncf %10 : vector<16x48xf32> to vector<16x48xbf16>
    %c0_3 = arith.constant 0 : index
    %c0_4 = arith.constant 0 : index
    %12 = vector.load %arg7[%c0_3, %c0_4] : memref<48x128xbf16, #tpu.memory_space<vmem>>, vector<48x128xbf16>
    %cst_5 = arith.constant dense<0.000000e+00> : vector<16x128xf32>
    %13 = tpu.matmul %11, %12, %cst_5 {dimension_numbers = #tpu.dot_dimension_numbers<[1], [0], [0], [1], [0, 0, 1, 1], [], []>} : vector<16x48xbf16>, vector<48x128xbf16>, vector<16x128xf32> -> vector<16x128xf32>
    %14 = tpu.iota {dimensions = array<i32: 0>} : vector<16x1xi32>
    %15 = vector.broadcast %6 : i32 to vector<16x1xi32>
    %16 = arith.addi %15, %14 : vector<16x1xi32>
    %c14_i32 = arith.constant 14 : i32
    %17 = vector.broadcast %c14_i32 : i32 to vector<16x1xi32>
    %18 = arith.cmpi slt, %16, %17 : vector<16x1xi32>
    %cst_6 = arith.constant 0.000000e+00 : f32
    %cst_7 = arith.constant 1.140000e+02 : f32
    %19 = vector.broadcast %cst_6 : f32 to vector<16x1xf32>
    %20 = vector.broadcast %cst_7 : f32 to vector<16x1xf32>
    %21 = arith.select %18, %19, %20 : vector<16x1xi1>, vector<16x1xf32>
    %c0_8 = arith.constant 0 : index
    %c0_9 = arith.constant 0 : index
    %22 = vector.load %arg8[%c0_8, %c0_9] : memref<1x128xf32, #tpu.memory_space<vmem>>, vector<1x128xf32>
    %23 = vector.broadcast %21 : vector<16x1xf32> to vector<16x128xf32>
    %24 = vector.broadcast %22 : vector<1x128xf32> to vector<16x128xf32>
    %25 = arith.maximumf %23, %24 : vector<16x128xf32>
    %26 = arith.addf %13, %25 : vector<16x128xf32>
    %27 = arith.index_cast %arg1 : i32 to index
    %28 = memref.load %arg3[%27] : memref<3xf32, #tpu.memory_space<smem>>
    %29 = vector.broadcast %28 : f32 to vector<16x128xf32>
    %30 = arith.mulf %26, %29 : vector<16x128xf32>
    %31 = arith.index_cast %arg1 : i32 to index
    %32 = memref.load %arg4[%31] : memref<3xf32, #tpu.memory_space<smem>>
    %33 = vector.broadcast %32 : f32 to vector<16x128xf32>
    %34 = arith.addf %30, %33 : vector<16x128xf32>
    %c0_10 = arith.constant 0 : index
    %c0_11 = arith.constant 0 : index
    %c0_12 = arith.constant 0 : index
    %35 = vector.load %arg9[%c0_10, %c0_11, %c0_12] : memref<1x16x128xf32, #tpu.memory_space<vmem>>, vector<1x16x128xf32>
    %36 = vector.shape_cast %35 : vector<1x16x128xf32> to vector<16x128xf32>
    %37 = vector.shape_cast %34 : vector<16x128xf32> to vector<1x16x128xf32>
    tpu.vector_store %arg9[%c0_10, %c0_11, %c0_12], %37 {strides = array<i32>} : memref<1x16x128xf32, #tpu.memory_space<vmem>>, vector<1x16x128xf32>,
    return
  }
  func.func @transform_0(%arg0: i32, %arg1: i32, %arg2: i32, %arg3: memref<3xf32, #tpu.memory_space<smem>>, %arg4: memref<3xf32, #tpu.memory_space<smem>>) -> (i32, i32, i32) {
    %c0_i32 = arith.constant 0 : i32
    %c0_i32_0 = arith.constant 0 : i32
    %c0_i32_1 = arith.constant 0 : i32
    return %arg1, %c0_i32, %c0_i32_0 : i32, i32, i32
  }
  func.func @transform_1(%arg0: i32, %arg1: i32, %arg2: i32, %arg3: memref<3xf32, #tpu.memory_space<smem>>, %arg4: memref<3xf32, #tpu.memory_space<smem>>) -> (i32, i32) {
    %c0_i32 = arith.constant 0 : i32
    %c0_i32_0 = arith.constant 0 : i32
    %c0_i32_1 = arith.constant 0 : i32
    return %c0_i32, %c0_i32_0 : i32, i32
  }
  func.func @transform_2(%arg0: i32, %arg1: i32, %arg2: i32, %arg3: memref<3xf32, #tpu.memory_space<smem>>, %arg4: memref<3xf32, #tpu.memory_space<smem>>) -> (i32, i32) {
    %c0_i32 = arith.constant 0 : i32
    %c0_i32_0 = arith.constant 0 : i32
    %c0_i32_1 = arith.constant 0 : i32
    return %c0_i32, %c0_i32_0 : i32, i32
  }
  func.func @transform_3(%arg0: i32, %arg1: i32, %arg2: i32, %arg3: memref<3xf32, #tpu.memory_space<smem>>, %arg4: memref<3xf32, #tpu.memory_space<smem>>) -> (i32, i32) {
    %c0_i32 = arith.constant 0 : i32
    %c0_i32_0 = arith.constant 0 : i32
    %c0_i32_1 = arith.constant 0 : i32
    return %c0_i32, %c0_i32_0 : i32, i32
  }
  func.func @transform_4(%arg0: i32, %arg1: i32, %arg2: i32, %arg3: memref<3xf32, #tpu.memory_space<smem>>, %arg4: memref<3xf32, #tpu.memory_space<smem>>) -> (i32, i32, i32) {
    %c1_i32 = arith.constant 1 : i32
    %0 = arith.muli %arg0, %c1_i32 : i32
    %1 = arith.addi %0, %arg2 : i32
    %c0_i32 = arith.constant 0 : i32
    %c0_i32_0 = arith.constant 0 : i32
    return %arg1, %1, %c0_i32 : i32, i32, i32
  }
}

module attributes {stable_mosaic.version = 11 : i64} {
  func.func @kernel(%arg0: i32, %arg1: i32, %arg2: i32, %arg3: memref<3xf32, #tpu.memory_space<smem>>, %arg4: memref<3xf32, #tpu.memory_space<smem>>, %arg5: memref<1x16x48xf32, #tpu.memory_space<vmem>>, %arg6: memref<16x16xbf16, #tpu.memory_space<vmem>>, %arg7: memref<48x128xbf16, #tpu.memory_space<vmem>>, %arg8: memref<1x128xf32, #tpu.memory_space<vmem>>, %arg9: memref<1x16x128xf32, #tpu.memory_space<vmem>>, %arg10: memref<16x48xbf16, #tpu.memory_space<vmem>>) attributes {dimension_semantics = [#tpu.dimension_semantics<parallel>, #tpu.dimension_semantics<arbitrary>, #tpu.dimension_semantics<arbitrary>], iteration_bounds = array<i64: 1, 3, 1>, scalar_prefetch = 2 : i64, scratch_operands = 1 : i64, tpu.core_type = #tpu.core_type<tc>, window_params = [{transform_indices = @transform_0, window_bounds = array<i64: 1, 16, 48>}, {pipeline_mode = #tpu.pipeline_mode<synchronous>, transform_indices = @transform_1, window_bounds = array<i64: 16, 16>}, {pipeline_mode = #tpu.pipeline_mode<synchronous>, transform_indices = @transform_2, window_bounds = array<i64: 48, 128>}, {pipeline_mode = #tpu.pipeline_mode<synchronous>, transform_indices = @transform_3, window_bounds = array<i64: 1, 128>}, {transform_indices = @transform_4, window_bounds = array<i64: 1, 16, 128>}]} {
    %c0_i32 = arith.constant 0 : i32
    %0 = arith.cmpi eq, %arg2, %c0_i32 : i32
    %1 = arith.extui %0 : i1 to i32
    %c0_i32_0 = arith.constant 0 : i32
    %2 = arith.cmpi ne, %1, %c0_i32_0 : i32
    scf.if %2 {
      %c0_13 = arith.constant 0 : index
      %c0_14 = arith.constant 0 : index
      %c0_15 = arith.constant 0 : index
      %38 = vector.load %arg5[%c0_13, %c0_14, %c0_15] : memref<1x16x48xf32, #tpu.memory_space<vmem>>, vector<1x16x48xf32>
      %39 = vector.shape_cast %38 : vector<1x16x48xf32> to vector<16x48xf32>
      %40 = arith.truncf %39 : vector<16x48xf32> to vector<16x48xbf16>
      %c0_16 = arith.constant 0 : index
      %c0_17 = arith.constant 0 : index
      %41 = vector.load %arg10[%c0_16, %c0_17] : memref<16x48xbf16, #tpu.memory_space<vmem>>, vector<16x48xbf16>
      tpu.vector_store %arg10[%c0_16, %c0_17], %40 {strides = array<i32>} : memref<16x48xbf16, #tpu.memory_space<vmem>>, vector<16x48xbf16>,
    } else {
    }
    %c1_i32 = arith.constant 1 : i32
    %3 = arith.muli %arg0, %c1_i32 : i32
    %4 = arith.addi %3, %arg2 : i32
    %c16_i32 = arith.constant 16 : i32
    %5 = arith.muli %4, %c16_i32 : i32
    %6 = tpu.assume_multiple %5, 16 : i32
    %7 = arith.index_cast %6 : i32 to index
    %c0 = arith.constant 0 : index
    %8 = vector.load %arg6[%7, %c0] : memref<16x16xbf16, #tpu.memory_space<vmem>>, vector<16x16xbf16>
    %c0_1 = arith.constant 0 : index
    %c0_2 = arith.constant 0 : index
    %9 = vector.load %arg10[%c0_1, %c0_2] : memref<16x48xbf16, #tpu.memory_space<vmem>>, vector<16x48xbf16>
    %cst = arith.constant dense<0.000000e+00> : vector<16x48xf32>
    %10 = tpu.matmul %8, %9, %cst {dimension_numbers = #tpu.dot_dimension_numbers<[1], [0], [0], [1], [0, 0, 1, 1], [], []>} : vector<16x16xbf16>, vector<16x48xbf16>, vector<16x48xf32> -> vector<16x48xf32>
    %11 = arith.truncf %10 : vector<16x48xf32> to vector<16x48xbf16>
    %c0_3 = arith.constant 0 : index
    %c0_4 = arith.constant 0 : index
    %12 = vector.load %arg7[%c0_3, %c0_4] : memref<48x128xbf16, #tpu.memory_space<vmem>>, vector<48x128xbf16>
    %cst_5 = arith.constant dense<0.000000e+00> : vector<16x128xf32>
    %13 = tpu.matmul %11, %12, %cst_5 {dimension_numbers = #tpu.dot_dimension_numbers<[1], [0], [0], [1], [0, 0, 1, 1], [], []>} : vector<16x48xbf16>, vector<48x128xbf16>, vector<16x128xf32> -> vector<16x128xf32>
    %14 = tpu.iota {dimensions = array<i32: 0>} : vector<16x1xi32>
    %15 = vector.broadcast %6 : i32 to vector<16x1xi32>
    %16 = arith.addi %15, %14 : vector<16x1xi32>
    %c14_i32 = arith.constant 14 : i32
    %17 = vector.broadcast %c14_i32 : i32 to vector<16x1xi32>
    %18 = arith.cmpi slt, %16, %17 : vector<16x1xi32>
    %cst_6 = arith.constant 0.000000e+00 : f32
    %cst_7 = arith.constant 1.140000e+02 : f32
    %19 = vector.broadcast %cst_6 : f32 to vector<16x1xf32>
    %20 = vector.broadcast %cst_7 : f32 to vector<16x1xf32>
    %21 = arith.select %18, %19, %20 : vector<16x1xi1>, vector<16x1xf32>
    %c0_8 = arith.constant 0 : index
    %c0_9 = arith.constant 0 : index
    %22 = vector.load %arg8[%c0_8, %c0_9] : memref<1x128xf32, #tpu.memory_space<vmem>>, vector<1x128xf32>
    %23 = vector.broadcast %21 : vector<16x1xf32> to vector<16x128xf32>
    %24 = vector.broadcast %22 : vector<1x128xf32> to vector<16x128xf32>
    %25 = arith.maximumf %23, %24 : vector<16x128xf32>
    %26 = arith.addf %13, %25 : vector<16x128xf32>
    %27 = arith.index_cast %arg1 : i32 to index
    %28 = memref.load %arg3[%27] : memref<3xf32, #tpu.memory_space<smem>>
    %29 = vector.broadcast %28 : f32 to vector<16x128xf32>
    %30 = arith.mulf %26, %29 : vector<16x128xf32>
    %31 = arith.index_cast %arg1 : i32 to index
    %32 = memref.load %arg4[%31] : memref<3xf32, #tpu.memory_space<smem>>
    %33 = vector.broadcast %32 : f32 to vector<16x128xf32>
    %34 = arith.addf %30, %33 : vector<16x128xf32>
    %c0_10 = arith.constant 0 : index
    %c0_11 = arith.constant 0 : index
    %c0_12 = arith.constant 0 : index
    %35 = vector.load %arg9[%c0_10, %c0_11, %c0_12] : memref<1x16x128xf32, #tpu.memory_space<vmem>>, vector<1x16x128xf32>
    %36 = vector.shape_cast %35 : vector<1x16x128xf32> to vector<16x128xf32>
    %37 = vector.shape_cast %34 : vector<16x128xf32> to vector<1x16x128xf32>
    tpu.vector_store %arg9[%c0_10, %c0_11, %c0_12], %37 {strides = array<i32>} : memref<1x16x128xf32, #tpu.memory_space<vmem>>, vector<1x16x128xf32>,
    return
  }
  func.func @transform_0(%arg0: i32, %arg1: i32, %arg2: i32, %arg3: memref<3xf32, #tpu.memory_space<smem>>, %arg4: memref<3xf32, #tpu.memory_space<smem>>) -> (i32, i32, i32) {
    %c0_i32 = arith.constant 0 : i32
    %c0_i32_0 = arith.constant 0 : i32
    %c0_i32_1 = arith.constant 0 : i32
    return %arg1, %c0_i32, %c0_i32_0 : i32, i32, i32
  }
  func.func @transform_1(%arg0: i32, %arg1: i32, %arg2: i32, %arg3: memref<3xf32, #tpu.memory_space<smem>>, %arg4: memref<3xf32, #tpu.memory_space<smem>>) -> (i32, i32) {
    %c0_i32 = arith.constant 0 : i32
    %c0_i32_0 = arith.constant 0 : i32
    %c0_i32_1 = arith.constant 0 : i32
    return %c0_i32, %c0_i32_0 : i32, i32
  }
  func.func @transform_2(%arg0: i32, %arg1: i32, %arg2: i32, %arg3: memref<3xf32, #tpu.memory_space<smem>>, %arg4: memref<3xf32, #tpu.memory_space<smem>>) -> (i32, i32) {
    %c0_i32 = arith.constant 0 : i32
    %c0_i32_0 = arith.constant 0 : i32
    %c0_i32_1 = arith.constant 0 : i32
    return %c0_i32, %c0_i32_0 : i32, i32
  }
  func.func @transform_3(%arg0: i32, %arg1: i32, %arg2: i32, %arg3: memref<3xf32, #tpu.memory_space<smem>>, %arg4: memref<3xf32, #tpu.memory_space<smem>>) -> (i32, i32) {
    %c0_i32 = arith.constant 0 : i32
    %c0_i32_0 = arith.constant 0 : i32
    %c0_i32_1 = arith.constant 0 : i32
    return %c0_i32, %c0_i32_0 : i32, i32
  }
  func.func @transform_4(%arg0: i32, %arg1: i32, %arg2: i32, %arg3: memref<3xf32, #tpu.memory_space<smem>>, %arg4: memref<3xf32, #tpu.memory_space<smem>>) -> (i32, i32, i32) {
    %c1_i32 = arith.constant 1 : i32
    %0 = arith.muli %arg0, %c1_i32 : i32
    %1 = arith.addi %0, %arg2 : i32
    %c0_i32 = arith.constant 0 : i32
    %c0_i32_0 = arith.constant 0 : i32
    return %arg1, %1, %c0_i32 : i32, i32, i32
  }
}

</mosaic_0001>

<llo_original>
// kernel: tpu_custom_call.1
$region0: #{tpu_custom_call.1}
  #allocation0 [shape = 'u32[]', space=smem, size = 0x4, offset = 0x4, fixed_abs, tag = 'smem constant byte address 0x4 - core index']
  #allocation1 [shape = 'u32[144,128]{1,0:T(1,128)}', space=vmem, size = 0x12000, scoped, tag = 'internal scratch']
  #allocation2 [shape = 'bf16[16,48]{1,0:T(16,128)(2,1)}', space=vmem, size = 0x1000, scoped, tag = 'scratch operand']
  #allocation3 [shape = 's32[1]{0}', space=sflag, size = 0x4, scoped, tag = 'scoped memory for tpu_custom_call.1']
  #allocation4 [shape = 'u8[512]{0}', space=smem, size = 0x200, scoped, tag = 'prefetched SMEM operand 0']
  #allocation5 [shape = 'u8[512]{0}', space=smem, size = 0x200, scoped, tag = 'prefetched SMEM operand 1']
  %s0 = inlined_call_operand.hbm [shape: f32[3], index: 0, kind: input, shape index: {}]
  %s1 = inlined_call_operand.vmem [shape: f32[3], index: 1, kind: input, shape index: {}]
  %s2 = inlined_call_operand.hbm [shape: u8[3,16,48], index: 2, kind: input, shape index: {}]
  %s3 = inlined_call_operand.vmem [shape: bf16[16,16], index: 3, kind: input, shape index: {}]
  %s4 = inlined_call_operand.hbm [shape: bf16[48,128], index: 4, kind: input, shape index: {}]
  %s5 = inlined_call_operand.vmem [shape: f32[1,128], index: 5, kind: input, shape index: {}]
  %s6 = inlined_call_operand.hbm [shape: f32[3,16,128], index: 6, kind: output, shape index: {}]
  %s7 = sld [smem:[#allocation0]]
  $region61: #{tpu_custom_call.1} parent=0
    _
  %s9 = ssub.s32 1, %s7
  %s10 = scalar_select 0, %s9, %s7
  %12 = dma.hbm_to_smem %s0, 16, [#allocation4], [#allocation3]
  %s13 = sshll.u32 %s1, 4
  %s14 = int_to_ptr.vmem [resolvable:$true] %s13
  %16 = dma.vmem_to_smem %s14, 16, [#allocation5], [#allocation3]
  %17 = dma.done [#allocation3], 32
  %18 = sfence
  $region1: #{tpu_custom_call.1} parent=0
    #allocation6 [shape = 'u8[4096]{0}', space=vmem, size = 0x1000, scoped, tag = 'input window, operand 2']
    #allocation7 [shape = 's32[2]{0}', space=sflag, size = 0x8, scoped, tag = 'scoped memory for tpu_custom_call.1']
    #allocation8 [shape = 's32[2]{0}', space=sflag, size = 0x8, scoped, tag = 'scoped memory for tpu_custom_call.1']
    #allocation9 [shape = 'u8[12288]{0}', space=vmem, size = 0x3000, scoped, tag = 'input window, operand 4, single buffered']
    #allocation10 [shape = 's32[1]{0}', space=sflag, size = 0x4, scoped, tag = 'scoped memory for tpu_custom_call.1']
    #allocation11 [shape = 'u8[16384]{0}', space=vmem, size = 0x4000, scoped, tag = 'output window, operand 0']
    %19 = vsyncpa [#allocation7], 0
    %s20 = scalar_lea.sflag [#allocation7], 1
    %21 = vsyncpa %s20, 0
    %22 = vsyncpa [#allocation10], 0
    %23 = vsyncpa [#allocation8], 0
    %s24 = scalar_lea.sflag [#allocation8], 1
    %25 = vsyncpa %s24, 0
    loop: start=0, step=1, limit=5
    $region2: #{tpu_custom_call.1} parent=1 // loop_pre_header
      _
    $region3: #{tpu_custom_call.1} parent=1 // loop_header
      %s27 = sphi 0, %s31
      %p28 = scmp.ge.s32.totalorder %s27, 5
      %s34 = sphi 0, %s53
      %s35 = sphi 0, %s49
      %s36 = sphi 0, %s45
      %s37 = sphi 0, %s34
      %s38 = sphi 0, %s35
      %s39 = sphi 0, %s36
      %s40 = sphi 0, %s37
      %s41 = sphi 0, %s38
      %s42 = sphi 0, %s39
      %s56 = sphi 0, %s58
      %s59 = sphi 0, %s56
      %s60 = sphi 0, %s59
      %s76 = sphi 0, %s60
      %s80 = sphi 0, %s80
      %s82 = sphi 0, %s80
      %s83 = sphi 0, %s82
      %s97 = sphi 0, %s83
      %s101 = sphi 0, %s101
      %s103 = sphi 0, %s101
      %s104 = sphi 0, %s103
      %s118 = sphi 0, %s104
      %s122 = sphi 0, %s122
      %s124 = sphi 0, %s122
      %s125 = sphi 0, %s124
      %s139 = sphi 0, %s125
      %s149 = sphi 0, %s151
      %s152 = sphi 0, %s149
      %s153 = sphi 0, %s152
      %s169 = sphi 0, %s153
    $region4: #{tpu_custom_call.1} parent=1 // loop_header_branch
      %30 = sbr.rel (%p28) target = $region8
    $region5: #{tpu_custom_call.1} parent=1 // loop_body
      %s32 = ssub.s32 %s27, 1
      %s33 = ssub.s32 %s27, 2
      %s43 = sadd.s32 1, %s36
      %p44 = scmp.ge.s32.totalorder %s43, 1
      %s45 = scalar_select %p44, 0, %s43
      %s46 = sadd.s32 1, %s35
      %s47 = scalar_select %p44, %s46, %s35
      %p48 = scmp.ge.s32.totalorder %s47, 3
      %s49 = scalar_select %p48, 0, %s47
      %s50 = sadd.s32 1, %s34
      %s51 = scalar_select %p48, %s50, %s34
      %p52 = scmp.ge.s32.totalorder %s51, 1
      %s53 = scalar_select %p52, 0, %s51
      %s54 = ssub.s32 %s35, %s49
      %p55 = scmp.eq.s32.totalorder %s54, 0
      %s57 = sadd.s32 %s56, 1
      %s58 = scalar_select %p55, %s56, %s57
      %p61 = pneg %p55
      %p62 = scmp.eq.s32.totalorder %s27, 2
      %p63 = por %p61, %p62
      %p64 = scmp.ne.s32.totalorder %s56, %s59
      %p65 = scmp.eq.s32.totalorder %s27, 0
      %p66 = por %p64, %p65
      %p67 = scmp.ne.s32.totalorder %s56, %s59
      %p68 = scmp.eq.s32.totalorder %s32, 2
      %p69 = por %p67, %p68
      %p70 = scmp.ne.s32.totalorder %s59, %s60
      %p71 = scmp.eq.s32.totalorder %s32, 0
      %p72 = por %p70, %p71
      %p73 = scmp.ne.s32.totalorder %s59, %s60
      %p74 = scmp.eq.s32.totalorder %s33, 2
      %p75 = por %p73, %p74
      %p77 = scmp.ne.s32.totalorder %s60, %s76
      %p78 = scmp.eq.s32.totalorder %s33, 0
      %p79 = por %p77, %p78
      %s81 = sadd.s32 %s80, 1
      %p84 = scmp.eq.s32.totalorder %s27, 2
      %p85 = scmp.ne.s32.totalorder %s80, %s82
      %p86 = scmp.eq.s32.totalorder %s27, 0
      %p87 = por %p85, %p86
      %p88 = scmp.ne.s32.totalorder %s80, %s82
      %p89 = scmp.eq.s32.totalorder %s32, 2
      %p90 = por %p88, %p89
      %p91 = scmp.ne.s32.totalorder %s82, %s83
      %p92 = scmp.eq.s32.totalorder %s32, 0
      %p93 = por %p91, %p92
      %p94 = scmp.ne.s32.totalorder %s82, %s83
      %p95 = scmp.eq.s32.totalorder %s33, 2
      %p96 = por %p94, %p95
      %p98 = scmp.ne.s32.totalorder %s83, %s97
      %p99 = scmp.eq.s32.totalorder %s33, 0
      %p100 = por %p98, %p99
      %s102 = sadd.s32 %s101, 1
      %p105 = scmp.eq.s32.totalorder %s27, 2
      %p106 = scmp.ne.s32.totalorder %s101, %s103
      %p107 = scmp.eq.s32.totalorder %s27, 0
      %p108 = por %p106, %p107
      %p109 = scmp.ne.s32.totalorder %s101, %s103
      %p110 = scmp.eq.s32.totalorder %s32, 2
      %p111 = por %p109, %p110
      %p112 = scmp.ne.s32.totalorder %s103, %s104
      %p113 = scmp.eq.s32.totalorder %s32, 0
      %p114 = por %p112, %p113
      %p115 = scmp.ne.s32.totalorder %s103, %s104
      %p116 = scmp.eq.s32.totalorder %s33, 2
      %p117 = por %p115, %p116
      %p119 = scmp.ne.s32.totalorder %s104, %s118
      %p120 = scmp.eq.s32.totalorder %s33, 0
      %p121 = por %p119, %p120
      %s123 = sadd.s32 %s122, 1
      %p126 = scmp.eq.s32.totalorder %s27, 2
      %p127 = scmp.ne.s32.totalorder %s122, %s124
      %p128 = scmp.eq.s32.totalorder %s27, 0
      %p129 = por %p127, %p128
      %p130 = scmp.ne.s32.totalorder %s122, %s124
      %p131 = scmp.eq.s32.totalorder %s32, 2
      %p132 = por %p130, %p131
      %p133 = scmp.ne.s32.totalorder %s124, %s125
      %p134 = scmp.eq.s32.totalorder %s32, 0
      %p135 = por %p133, %p134
      %p136 = scmp.ne.s32.totalorder %s124, %s125
      %p137 = scmp.eq.s32.totalorder %s33, 2
      %p138 = por %p136, %p137
      %p140 = scmp.ne.s32.totalorder %s125, %s139
      %p141 = scmp.eq.s32.totalorder %s33, 0
      %p142 = por %p140, %p141
      %s143 = sadd.s32 %s34, %s36
      %s144 = sadd.s32 %s53, %s45
      %s145 = ssub.s32 %s35, %s49
      %s146 = ssub.s32 %s143, %s144
      %s147 = sor.u32 %s145, %s146
      %p148 = scmp.eq.s32.totalorder %s147, 0
      %s150 = sadd.s32 %s149, 1
      %s151 = scalar_select %p148, %s149, %s150
      %p154 = pneg %p148
      %p155 = scmp.eq.s32.totalorder %s27, 2
      %p156 = por %p154, %p155
      %p157 = scmp.ne.s32.totalorder %s149, %s152
      %p158 = scmp.eq.s32.totalorder %s27, 0
      %p159 = por %p157, %p158
      %p160 = scmp.ne.s32.totalorder %s149, %s152
      %p161 = scmp.eq.s32.totalorder %s32, 2
      %p162 = por %p160, %p161
      %p163 = scmp.ne.s32.totalorder %s152, %s153
      %p164 = scmp.eq.s32.totalorder %s32, 0
      %p165 = por %p163, %p164
      %p166 = scmp.ne.s32.totalorder %s152, %s153
      %p167 = scmp.eq.s32.totalorder %s33, 2
      %p168 = por %p166, %p167
      %p170 = scmp.ne.s32.totalorder %s153, %s169
      %p171 = scmp.eq.s32.totalorder %s33, 0
      %p172 = por %p170, %p171
      %p173 = scmp.le.s32.totalorder 1, %s27
      %p174 = scmp.lt.s32.totalorder %s27, 4
      %p175 = pnand %p173, %p174
      %p176 = pneg %p175
      // Predicated region
      $region9: #{tpu_custom_call.1} parent=5 // pred_check
        _
      $region10: #{tpu_custom_call.1} parent=5 // pred_check_branch
        %178 = sbr.rel (%p175) target = $region12
      $region11: #{tpu_custom_call.1} parent=5 // pred_region
        %s179 = ssub.s32 %s27, 1
        // Predicated region
        $region13: #{tpu_custom_call.1} parent=11 // pred_check
          %p180 = pneg %p93
        $region14: #{tpu_custom_call.1} parent=11 // pred_check_branch
          %182 = sbr.rel (%p180) target = $region16
        $region15: #{tpu_custom_call.1} parent=11 // pred_region
          _
        $region16: #{tpu_custom_call.1} parent=11 // pred_fallthru
          _
        // Predicated region
        $region17: #{tpu_custom_call.1} parent=11 // pred_check
          %p183 = pneg %p114
        $region18: #{tpu_custom_call.1} parent=11 // pred_check_branch
          %185 = sbr.rel (%p183) target = $region20
        $region19: #{tpu_custom_call.1} parent=11 // pred_region
          %s187 = ssub.s32 384, 384
          %188 = vsyncadd [#allocation10], %s187
          %s189 = sshll.u32 [#allocation9], 4
          %s190 = int_to_ptr.vmem [resolvable:$true] %s189
          %195 = dma.hbm_to_vmem [thread:$0]  %s4, 384, %s190, [#allocation10], 64, 64, 4
        $region20: #{tpu_custom_call.1} parent=11 // pred_fallthru
          _
        // Predicated region
        $region21: #{tpu_custom_call.1} parent=11 // pred_check
          %p196 = pneg %p135
        $region22: #{tpu_custom_call.1} parent=11 // pred_check_branch
          %198 = sbr.rel (%p196) target = $region24
        $region23: #{tpu_custom_call.1} parent=11 // pred_region
          _
        $region24: #{tpu_custom_call.1} parent=11 // pred_fallthru
          _
      $region12: #{tpu_custom_call.1} parent=5 // pred_fallthru
        _
      %p199 = scmp.lt.s32.totalorder %s27, 3
      // Predicated region
      $region25: #{tpu_custom_call.1} parent=5 // pred_check
        %p200 = pneg %p199
      $region26: #{tpu_custom_call.1} parent=5 // pred_check_branch
        %202 = sbr.rel (%p200) target = $region28
      $region27: #{tpu_custom_call.1} parent=5 // pred_region
        // Predicated region
        $region29: #{tpu_custom_call.1} parent=27 // pred_check
          %p203 = pneg %p66
        $region30: #{tpu_custom_call.1} parent=27 // pred_check_branch
          %205 = sbr.rel (%p203) target = $region32
        $region31: #{tpu_custom_call.1} parent=27 // pred_region
          %s206 = sand.u32 %s56, 1
          %s207 = scalar_lea.sflag [#allocation7], %s206
          %s208 = sand.u32 %s56, 1
          %s209 = smul.addr %s208, 4
          %s210 = scalar_lea.vmem [#allocation6], %s209
          %s212 = ssub.s32 64, 64
          %213 = vsyncadd %s207, %s212
          %s214 = smul.addr %s35, 2
          %s215 = smul.addr %s214, 32
          %s216 = scalar_lea.hbm %s2, %s215
          %s217 = sshll.u32 %s210, 4
          %s218 = int_to_ptr.vmem [resolvable:$true] %s217
          %223 = dma.hbm_to_vmem [thread:$0]  %s216, 64, %s218, %s207, 32, 32, 2
        $region32: #{tpu_custom_call.1} parent=27 // pred_fallthru
          _
      $region28: #{tpu_custom_call.1} parent=5 // pred_fallthru
        _
      %p224 = scmp.le.s32.totalorder 1, %s27
      %p225 = scmp.lt.s32.totalorder %s27, 4
      %p226 = pnand %p224, %p225
      %p227 = pneg %p226
      // Predicated region
      $region33: #{tpu_custom_call.1} parent=5 // pred_check
        _
      $region34: #{tpu_custom_call.1} parent=5 // pred_check_branch
        %229 = sbr.rel (%p226) target = $region36
      $region35: #{tpu_custom_call.1} parent=5 // pred_region
        %s230 = ssub.s32 %s27, 1
        %s231 = sand.u32 %s59, 1
        %s232 = scalar_lea.sflag [#allocation7], %s231
        %s233 = sand.u32 %s59, 1
        %s234 = smul.addr %s233, 4
        %s235 = scalar_lea.vmem [#allocation6], %s234
        // Predicated region
        $region37: #{tpu_custom_call.1} parent=35 // pred_check
          %p236 = pneg %p72
        $region38: #{tpu_custom_call.1} parent=35 // pred_check_branch
          %238 = sbr.rel (%p236) target = $region40
        $region39: #{tpu_custom_call.1} parent=35 // pred_region
          %239 = dma.done %s232, 64
        $region40: #{tpu_custom_call.1} parent=35 // pred_fallthru
          _
        // Predicated region
        $region41: #{tpu_custom_call.1} parent=35 // pred_check
          %p240 = pneg %p114
        $region42: #{tpu_custom_call.1} parent=35 // pred_check_branch
          %242 = sbr.rel (%p240) target = $region44
        $region43: #{tpu_custom_call.1} parent=35 // pred_region
          %243 = dma.done [#allocation10], 384
        $region44: #{tpu_custom_call.1} parent=35 // pred_fallthru
          _
        %s244 = sand.u32 %s59, 1
        %s245 = scalar_lea.sflag [#allocation7], %s244
        %s246 = sand.u32 %s59, 1
        %s247 = smul.addr %s246, 4
        %s248 = scalar_lea.vmem [#allocation6], %s247
        %p249 = pneg %p72
        %p250 = pneg %p69
        %p251 = pneg %p93
        %p252 = pneg %p90
        %p253 = pneg %p114
        %p254 = pneg %p111
        %p255 = pneg %p135
        %p256 = pneg %p132
        %p257 = pneg %p165
        %p258 = pneg %p162
        %s259 = sand.u32 %s152, 1
        %s260 = scalar_lea.sflag [#allocation8], %s259
        %s261 = sand.u32 %s152, 1
        %s262 = smul.addr %s261, 16
        %s263 = scalar_lea.vmem [#allocation11], %s262
        %s264 = sadd.s32 %s37, %s39
        %s265 = smul.u32 2, %s264
        %p267 = scmp.eq.s32.totalorder %s39, 0
        // Predicated region
        $region45: #{tpu_custom_call.1} parent=35 // pred_check
          %p268 = pneg %p267
        $region46: #{tpu_custom_call.1} parent=35 // pred_check_branch
          %270 = sbr.rel (%p268) target = $region48
        $region47: #{tpu_custom_call.1} parent=35 // pred_region
          %v271 = vld [vmem:[%s235] sm:$0x3]
          %v272 = vld [vmem:[%s235 + $0x2] sm:$0x3]
          %v273 = vunpack.c.0.s8 %v271
          %v274 = vunpack.c.0.s8 %v272
          %v275 = vpack.c.b16 %v274, %v273
          %v276 = vpack.c.b8 %v275, %v275
          %v277 = vunpack.c.0.s8 %v276
          %v278 = vunpack.c.1.s8 %v276
          %v279 = vcvt.s32.f32 %v277
          %v280 = vcvt.s32.f32 %v278
          %vm281 = vcmp.lt.f32.partialorder %v279, 0.0
          %vm282 = vcmp.lt.f32.partialorder %v280, 0.0
          %v283 = vadd.f32 %v279, 256.0
          %v284 = vadd.f32 %v280, 256.0
          %v285 = vsel %vm281, %v283, %v279
          %v286 = vsel %vm282, %v284, %v280
          %v287 = vpack.c.bf16 %v286, %v285
          %vm288 = vcmask 392192
          %289 = vst.msk [vmem:[#allocation2] sm:$0xff] %vm288, %v287
        $region48: #{tpu_custom_call.1} parent=35 // pred_fallthru
          _
        %s290 = sadd.s32 %s37, %s39
        %s291 = smul.u32 %s290, 16
        %s292 = sshra.s32 %s291, 3
        %s293 = sand.u32 %s291, 7
        %s294 = smul.addr %s292, 4
        %s295 = scalar_lea.vmem %s3, %s294
        %v296 = vld [vmem:[%s295] sm:$0xf]
        %v297 = vld [vmem:[%s295 + $0x4] sm:$0xf]
        %v298 = vld [vmem:[#allocation2] sm:$0xff]
        %v301 = vunpack.c.l.b16 %v296
        %v302 = vunpack.c.l.b16 %v297
        %v303 = vpack.c.b16 %v302, %v301
        %vm304 = vcmask 130048
        %v306 = vsel %vm304, %v303, 0
        %308 = vmatprep.subr.bf16.mxu0 0
        %309 = vmatpush1.bf16.msra.mxu0 %v298
        %310 = vmatprep.subr.bf16.mxu0 0
        %311 = vmatpush1.bf16.msra.mxu0 0
        %312 = vmatprep.subr.bf16.mxu0 0
        %313 = vmatpush1.bf16.msra.mxu0 0
        %314 = vmatprep.subr.bf16.mxu0 0
        %315 = vmatpush1.bf16.msra.mxu0 0
        %316 = vmatprep.subr.bf16.mxu0 0
        %317 = vmatpush1.bf16.msra.mxu0 0
        %318 = vmatprep.subr.bf16.mxu0 0
        %319 = vmatpush1.bf16.msra.mxu0 0
        %320 = vmatprep.subr.bf16.mxu0 0
        %321 = vmatpush1.bf16.msra.mxu0 0
        %322 = vmatprep.subr.bf16.mxu0 0
        %323 = vmatpush1.bf16.msra.mxu0 0
        %324 = vmatprep.subr.bf16.mxu0 0
        %325 = vmatpush1.bf16.msra.mxu0 0
        %326 = vmatprep.subr.bf16.mxu0 0
        %327 = vmatpush1.bf16.msra.mxu0 0
        %328 = vmatprep.subr.bf16.mxu0 0
        %329 = vmatpush1.bf16.msra.mxu0 0
        %330 = vmatprep.subr.bf16.mxu0 0
        %331 = vmatpush1.bf16.msra.mxu0 0
        %332 = vmatprep.subr.bf16.mxu0 0
        %333 = vmatpush1.bf16.msra.mxu0 0
        %334 = vmatprep.subr.bf16.mxu0 0
        %335 = vmatpush1.bf16.msra.mxu0 0
        %336 = vmatprep.subr.bf16.mxu0 0
        %337 = vmatpush1.bf16.msra.mxu0 0
        %338 = vmatprep.subr.bf16.mxu0 0
        %339 = vmatpush1.bf16.msra.mxu0 0
        %340 = vmatprep.mubr.bf16.mxu0 0
        %341 = vmatmul.mubr.bf16.gmra.mrb[0].mxu0 %v306
        %v342 = vpop.f32.mrb[0].mxu0
        %v343 = vadd.f32 0.0, %v342
        %v344 = vpop.f32.mrb[0].mxu0
        %v345 = vpop.f32.mrb[0].mxu0
        %v346 = vadd.f32 0.0, %v345
        %v347 = vpop.f32.mrb[0].mxu0
        %348 = vdwg.mxu0
        %v349 = vpack.c.bf16 %v346, %v343
        %v350 = vld [vmem:[#allocation9] sm:$0xf]
        %v351 = vld [vmem:[#allocation9 + $0x4] sm:$0xf]
        %v352 = vld [vmem:[#allocation9 + $0x8] sm:$0xf]
        %v353 = vld [vmem:[#allocation9 + $0xc] sm:$0xf]
        %v354 = vld [vmem:[#allocation9 + $0x10] sm:$0xf]
        %v355 = vld [vmem:[#allocation9 + $0x14] sm:$0xf]
        %v356 = vlaneseq
        %v357 = vshrl.u32 %v356, 7
        %v358 = vadd.s32 %v357, 8
        %v359 = vstv %s291
        %v360 = vadd.s32 %v359, %v357
        %v361 = vadd.s32 %v359, %v358
        %vm362 = vcmp.lt.s32.totalorder %v360, 14
        %vm363 = vcmp.lt.s32.totalorder %v361, 14
        %v364 = vsel %vm362, 0.0, 114.0
        %v365 = vsel %vm363, 0.0, 114.0
        %v366 = vld [vmem:[%s5] sm:$0x1]
        %v368 = vlaneseq
        %v369 = vshrl.u32 %v368, 7
        %v370 = vsub.s32 0, %v369
        %v371 = vrot.slane %v366, %v370
        %v373 = vmax.f32 %v364, %v371
        %v374 = vmax.f32 %v365, %v371
        %v381 = vunpack.c.l.b16 %v350
        %v382 = vunpack.c.l.b16 %v351
        %v383 = vunpack.c.l.b16 %v352
        %v384 = vunpack.c.l.b16 %v353
        %v385 = vunpack.c.l.b16 %v354
        %v386 = vunpack.c.l.b16 %v355
        %v387 = vpack.c.b16 %v382, %v381
        %v388 = vpack.c.b16 %v384, %v383
        %v389 = vpack.c.b16 %v386, %v385
        %vm393 = vcmask 392192
        %v395 = vsel %vm393, %v349, 0
        %397 = vmatprep.subr.bf16.mxu0 0
        %398 = vmatpush1.bf16.msra.mxu0 %v387
        %399 = vmatprep.subr.bf16.mxu0 0
        %400 = vmatpush1.bf16.msra.mxu0 %v388
        %401 = vmatprep.subr.bf16.mxu0 0
        %402 = vmatpush1.bf16.msra.mxu0 %v389
        %403 = vmatprep.subr.bf16.mxu0 0
        %404 = vmatpush1.bf16.msra.mxu0 0
        %405 = vmatprep.subr.bf16.mxu0 0
        %406 = vmatpush1.bf16.msra.mxu0 0
        %407 = vmatprep.subr.bf16.mxu0 0
        %408 = vmatpush1.bf16.msra.mxu0 0
        %409 = vmatprep.subr.bf16.mxu0 0
        %410 = vmatpush1.bf16.msra.mxu0 0
        %411 = vmatprep.subr.bf16.mxu0 0
        %412 = vmatpush1.bf16.msra.mxu0 0
        %413 = vmatprep.subr.bf16.mxu0 0
        %414 = vmatpush1.bf16.msra.mxu0 0
        %415 = vmatprep.subr.bf16.mxu0 0
        %416 = vmatpush1.bf16.msra.mxu0 0
        %417 = vmatprep.subr.bf16.mxu0 0
        %418 = vmatpush1.bf16.msra.mxu0 0
        %419 = vmatprep.subr.bf16.mxu0 0
        %420 = vmatpush1.bf16.msra.mxu0 0
        %421 = vmatprep.subr.bf16.mxu0 0
        %422 = vmatpush1.bf16.msra.mxu0 0
        %423 = vmatprep.subr.bf16.mxu0 0
        %424 = vmatpush1.bf16.msra.mxu0 0
        %425 = vmatprep.subr.bf16.mxu0 0
        %426 = vmatpush1.bf16.msra.mxu0 0
        %427 = vmatprep.subr.bf16.mxu0 0
        %428 = vmatpush1.bf16.msra.mxu0 0
        %429 = vmatprep.mubr.bf16.mxu0 0
        %430 = vmatmul.mubr.bf16.gmra.mrb[0].mxu0 %v395
        %v431 = vpop.f32.mrb[0].mxu0
        %v432 = vadd.f32 %v373, %v431
        %v433 = vpop.f32.mrb[0].mxu0
        %v434 = vpop.f32.mrb[0].mxu0
        %v435 = vadd.f32 %v374, %v434
        %v436 = vpop.f32.mrb[0].mxu0
        %437 = vdwg.mxu0
        %s438 = sld [smem:[#allocation4 + %s38]]
        %v439 = vstv %s438
        %v440 = vmul.f32 %v432, %v439
        %v441 = vmul.f32 %v435, %v439
        %s442 = sld [smem:[#allocation5 + %s38]]
        %v443 = vstv %s442
        %v444 = vadd.f32 %v440, %v443
        %v445 = vadd.f32 %v441, %v443
        %446 = vst [vmem:[%s263] sm:$0xff] %v444
        %447 = vst [vmem:[%s263 + $0x8] sm:$0xff] %v445
        %s448 = sand.u32 %s152, 1
        %s449 = scalar_lea.sflag [#allocation8], %s448
        %s450 = sand.u32 %s152, 1
        %s451 = smul.addr %s450, 16
        %s452 = scalar_lea.vmem [#allocation11], %s451
        // Predicated region
        $region49: #{tpu_custom_call.1} parent=35 // pred_check
          %p453 = pneg %p162
        $region50: #{tpu_custom_call.1} parent=35 // pred_check_branch
          %455 = sbr.rel (%p453) target = $region52
        $region51: #{tpu_custom_call.1} parent=35 // pred_region
          %s456 = sadd.s32 %s37, %s39
          %s457 = smul.u32 2, %s456
          %s459 = ssub.s32 256, 256
          %460 = vsyncadd %s449, %s459
          %s461 = smul.addr %s38, 2
          %s462 = sadd.s32 %s457, %s461
          %s463 = smul.addr %s462, 128
          %s464 = scalar_lea.hbm %s6, %s463
          %s465 = sshll.u32 %s452, 4
          %s466 = int_to_ptr.vmem [resolvable:$true] %s465
          %471 = dma.vmem_to_hbm [thread:$0]  %s466, 256, %s464, %s449, 128, 128, 8
        $region52: #{tpu_custom_call.1} parent=35 // pred_fallthru
          _
      $region36: #{tpu_custom_call.1} parent=5 // pred_fallthru
        _
      %p472 = scmp.le.s32.totalorder 2, %s27
      // Predicated region
      $region53: #{tpu_custom_call.1} parent=5 // pred_check
        %p473 = pneg %p472
      $region54: #{tpu_custom_call.1} parent=5 // pred_check_branch
        %475 = sbr.rel (%p473) target = $region56
      $region55: #{tpu_custom_call.1} parent=5 // pred_region
        %s476 = ssub.s32 %s27, 2
        // Predicated region
        $region57: #{tpu_custom_call.1} parent=55 // pred_check
          %p477 = pneg %p168
        $region58: #{tpu_custom_call.1} parent=55 // pred_check_branch
          %479 = sbr.rel (%p477) target = $region60
        $region59: #{tpu_custom_call.1} parent=55 // pred_region
          %s480 = sand.u32 %s153, 1
          %s481 = scalar_lea.sflag [#allocation8], %s480
          %s482 = sand.u32 %s153, 1
          %s483 = smul.addr %s482, 16
          %s484 = scalar_lea.vmem [#allocation11], %s483
          %485 = dma.done %s481, 256
        $region60: #{tpu_custom_call.1} parent=55 // pred_fallthru
          _
      $region56: #{tpu_custom_call.1} parent=5 // pred_fallthru
        _
    $region6: #{tpu_custom_call.1} parent=1 // loop_footer
      %s31 = sadd.s32 1, %s27
    $region7: #{tpu_custom_call.1} parent=1 // loop_footer_branch
      %26 = sbr.rel target = $region3
    $region8: #{tpu_custom_call.1} parent=1 // loop_exit
      _
    %486 = vsyncpa [#allocation7], 1
    %s487 = scalar_lea.sflag [#allocation7], 1
    %488 = vsyncpa %s487, 1
    %489 = vsyncpa [#allocation10], 1
    %490 = vsyncpa [#allocation8], 1
    %s491 = scalar_lea.sflag [#allocation8], 1
    %492 = vsyncpa %s491, 1

// kernel: tpu_custom_call.1
$region0: #{tpu_custom_call.1}
  #allocation0 [shape = 'u32[]', space=smem, size = 0x4, offset = 0x4, fixed_abs, tag = 'smem constant byte address 0x4 - core index']
  #allocation1 [shape = 'u32[144,128]{1,0:T(1,128)}', space=vmem, size = 0x12000, scoped, tag = 'internal scratch']
  #allocation2 [shape = 'bf16[16,48]{1,0:T(16,128)(2,1)}', space=vmem, size = 0x1000, scoped, tag = 'scratch operand']
  #allocation3 [shape = 's32[1]{0}', space=sflag, size = 0x4, scoped, tag = 'scoped memory for tpu_custom_call.1']
  #allocation4 [shape = 'u8[512]{0}', space=smem, size = 0x200, scoped, tag = 'prefetched SMEM operand 0']
  #allocation5 [shape = 'u8[512]{0}', space=smem, size = 0x200, scoped, tag = 'prefetched SMEM operand 1']
  %s0 = inlined_call_operand.hbm [shape: f32[3], index: 0, kind: input, shape index: {}]
  %s1 = inlined_call_operand.vmem [shape: f32[3], index: 1, kind: input, shape index: {}]
  %s2 = inlined_call_operand.hbm [shape: f32[3,16,48], index: 2, kind: input, shape index: {}]
  %s3 = inlined_call_operand.vmem [shape: bf16[16,16], index: 3, kind: input, shape index: {}]
  %s4 = inlined_call_operand.hbm [shape: bf16[48,128], index: 4, kind: input, shape index: {}]
  %s5 = inlined_call_operand.vmem [shape: f32[1,128], index: 5, kind: input, shape index: {}]
  %s6 = inlined_call_operand.hbm [shape: f32[3,16,128], index: 6, kind: output, shape index: {}]
  %s7 = sld [smem:[#allocation0]]
  $region61: #{tpu_custom_call.1} parent=0
    _
  %s9 = ssub.s32 1, %s7
  %s10 = scalar_select 0, %s9, %s7
  %12 = dma.hbm_to_smem %s0, 16, [#allocation4], [#allocation3]
  %s13 = sshll.u32 %s1, 4
  %s14 = int_to_ptr.vmem [resolvable:$true] %s13
  %16 = dma.vmem_to_smem %s14, 16, [#allocation5], [#allocation3]
  %17 = dma.done [#allocation3], 32
  %18 = sfence
  $region1: #{tpu_custom_call.1} parent=0
    #allocation6 [shape = 'u8[16384]{0}', space=vmem, size = 0x4000, scoped, tag = 'input window, operand 2']
    #allocation7 [shape = 's32[2]{0}', space=sflag, size = 0x8, scoped, tag = 'scoped memory for tpu_custom_call.1']
    #allocation8 [shape = 's32[2]{0}', space=sflag, size = 0x8, scoped, tag = 'scoped memory for tpu_custom_call.1']
    #allocation9 [shape = 'u8[12288]{0}', space=vmem, size = 0x3000, scoped, tag = 'input window, operand 4, single buffered']
    #allocation10 [shape = 's32[1]{0}', space=sflag, size = 0x4, scoped, tag = 'scoped memory for tpu_custom_call.1']
    #allocation11 [shape = 'u8[16384]{0}', space=vmem, size = 0x4000, scoped, tag = 'output window, operand 0']
    %19 = vsyncpa [#allocation7], 0
    %s20 = scalar_lea.sflag [#allocation7], 1
    %21 = vsyncpa %s20, 0
    %22 = vsyncpa [#allocation10], 0
    %23 = vsyncpa [#allocation8], 0
    %s24 = scalar_lea.sflag [#allocation8], 1
    %25 = vsyncpa %s24, 0
    loop: start=0, step=1, limit=5
    $region2: #{tpu_custom_call.1} parent=1 // loop_pre_header
      _
    $region3: #{tpu_custom_call.1} parent=1 // loop_header
      %s27 = sphi 0, %s31
      %p28 = scmp.ge.s32.totalorder %s27, 5
      %s34 = sphi 0, %s53
      %s35 = sphi 0, %s49
      %s36 = sphi 0, %s45
      %s37 = sphi 0, %s34
      %s38 = sphi 0, %s35
      %s39 = sphi 0, %s36
      %s40 = sphi 0, %s37
      %s41 = sphi 0, %s38
      %s42 = sphi 0, %s39
      %s56 = sphi 0, %s58
      %s59 = sphi 0, %s56
      %s60 = sphi 0, %s59
      %s76 = sphi 0, %s60
      %s80 = sphi 0, %s80
      %s82 = sphi 0, %s80
      %s83 = sphi 0, %s82
      %s97 = sphi 0, %s83
      %s101 = sphi 0, %s101
      %s103 = sphi 0, %s101
      %s104 = sphi 0, %s103
      %s118 = sphi 0, %s104
      %s122 = sphi 0, %s122
      %s124 = sphi 0, %s122
      %s125 = sphi 0, %s124
      %s139 = sphi 0, %s125
      %s149 = sphi 0, %s151
      %s152 = sphi 0, %s149
      %s153 = sphi 0, %s152
      %s169 = sphi 0, %s153
    $region4: #{tpu_custom_call.1} parent=1 // loop_header_branch
      %30 = sbr.rel (%p28) target = $region8
    $region5: #{tpu_custom_call.1} parent=1 // loop_body
      %s32 = ssub.s32 %s27, 1
      %s33 = ssub.s32 %s27, 2
      %s43 = sadd.s32 1, %s36
      %p44 = scmp.ge.s32.totalorder %s43, 1
      %s45 = scalar_select %p44, 0, %s43
      %s46 = sadd.s32 1, %s35
      %s47 = scalar_select %p44, %s46, %s35
      %p48 = scmp.ge.s32.totalorder %s47, 3
      %s49 = scalar_select %p48, 0, %s47
      %s50 = sadd.s32 1, %s34
      %s51 = scalar_select %p48, %s50, %s34
      %p52 = scmp.ge.s32.totalorder %s51, 1
      %s53 = scalar_select %p52, 0, %s51
      %s54 = ssub.s32 %s35, %s49
      %p55 = scmp.eq.s32.totalorder %s54, 0
      %s57 = sadd.s32 %s56, 1
      %s58 = scalar_select %p55, %s56, %s57
      %p61 = pneg %p55
      %p62 = scmp.eq.s32.totalorder %s27, 2
      %p63 = por %p61, %p62
      %p64 = scmp.ne.s32.totalorder %s56, %s59
      %p65 = scmp.eq.s32.totalorder %s27, 0
      %p66 = por %p64, %p65
      %p67 = scmp.ne.s32.totalorder %s56, %s59
      %p68 = scmp.eq.s32.totalorder %s32, 2
      %p69 = por %p67, %p68
      %p70 = scmp.ne.s32.totalorder %s59, %s60
      %p71 = scmp.eq.s32.totalorder %s32, 0
      %p72 = por %p70, %p71
      %p73 = scmp.ne.s32.totalorder %s59, %s60
      %p74 = scmp.eq.s32.totalorder %s33, 2
      %p75 = por %p73, %p74
      %p77 = scmp.ne.s32.totalorder %s60, %s76
      %p78 = scmp.eq.s32.totalorder %s33, 0
      %p79 = por %p77, %p78
      %s81 = sadd.s32 %s80, 1
      %p84 = scmp.eq.s32.totalorder %s27, 2
      %p85 = scmp.ne.s32.totalorder %s80, %s82
      %p86 = scmp.eq.s32.totalorder %s27, 0
      %p87 = por %p85, %p86
      %p88 = scmp.ne.s32.totalorder %s80, %s82
      %p89 = scmp.eq.s32.totalorder %s32, 2
      %p90 = por %p88, %p89
      %p91 = scmp.ne.s32.totalorder %s82, %s83
      %p92 = scmp.eq.s32.totalorder %s32, 0
      %p93 = por %p91, %p92
      %p94 = scmp.ne.s32.totalorder %s82, %s83
      %p95 = scmp.eq.s32.totalorder %s33, 2
      %p96 = por %p94, %p95
      %p98 = scmp.ne.s32.totalorder %s83, %s97
      %p99 = scmp.eq.s32.totalorder %s33, 0
      %p100 = por %p98, %p99
      %s102 = sadd.s32 %s101, 1
      %p105 = scmp.eq.s32.totalorder %s27, 2
      %p106 = scmp.ne.s32.totalorder %s101, %s103
      %p107 = scmp.eq.s32.totalorder %s27, 0
      %p108 = por %p106, %p107
      %p109 = scmp.ne.s32.totalorder %s101, %s103
      %p110 = scmp.eq.s32.totalorder %s32, 2
      %p111 = por %p109, %p110
      %p112 = scmp.ne.s32.totalorder %s103, %s104
      %p113 = scmp.eq.s32.totalorder %s32, 0
      %p114 = por %p112, %p113
      %p115 = scmp.ne.s32.totalorder %s103, %s104
      %p116 = scmp.eq.s32.totalorder %s33, 2
      %p117 = por %p115, %p116
      %p119 = scmp.ne.s32.totalorder %s104, %s118
      %p120 = scmp.eq.s32.totalorder %s33, 0
      %p121 = por %p119, %p120
      %s123 = sadd.s32 %s122, 1
      %p126 = scmp.eq.s32.totalorder %s27, 2
      %p127 = scmp.ne.s32.totalorder %s122, %s124
      %p128 = scmp.eq.s32.totalorder %s27, 0
      %p129 = por %p127, %p128
      %p130 = scmp.ne.s32.totalorder %s122, %s124
      %p131 = scmp.eq.s32.totalorder %s32, 2
      %p132 = por %p130, %p131
      %p133 = scmp.ne.s32.totalorder %s124, %s125
      %p134 = scmp.eq.s32.totalorder %s32, 0
      %p135 = por %p133, %p134
      %p136 = scmp.ne.s32.totalorder %s124, %s125
      %p137 = scmp.eq.s32.totalorder %s33, 2
      %p138 = por %p136, %p137
      %p140 = scmp.ne.s32.totalorder %s125, %s139
      %p141 = scmp.eq.s32.totalorder %s33, 0
      %p142 = por %p140, %p141
      %s143 = sadd.s32 %s34, %s36
      %s144 = sadd.s32 %s53, %s45
      %s145 = ssub.s32 %s35, %s49
      %s146 = ssub.s32 %s143, %s144
      %s147 = sor.u32 %s145, %s146
      %p148 = scmp.eq.s32.totalorder %s147, 0
      %s150 = sadd.s32 %s149, 1
      %s151 = scalar_select %p148, %s149, %s150
      %p154 = pneg %p148
      %p155 = scmp.eq.s32.totalorder %s27, 2
      %p156 = por %p154, %p155
      %p157 = scmp.ne.s32.totalorder %s149, %s152
      %p158 = scmp.eq.s32.totalorder %s27, 0
      %p159 = por %p157, %p158
      %p160 = scmp.ne.s32.totalorder %s149, %s152
      %p161 = scmp.eq.s32.totalorder %s32, 2
      %p162 = por %p160, %p161
      %p163 = scmp.ne.s32.totalorder %s152, %s153
      %p164 = scmp.eq.s32.totalorder %s32, 0
      %p165 = por %p163, %p164
      %p166 = scmp.ne.s32.totalorder %s152, %s153
      %p167 = scmp.eq.s32.totalorder %s33, 2
      %p168 = por %p166, %p167
      %p170 = scmp.ne.s32.totalorder %s153, %s169
      %p171 = scmp.eq.s32.totalorder %s33, 0
      %p172 = por %p170, %p171
      %p173 = scmp.le.s32.totalorder 1, %s27
      %p174 = scmp.lt.s32.totalorder %s27, 4
      %p175 = pnand %p173, %p174
      %p176 = pneg %p175
      // Predicated region
      $region9: #{tpu_custom_call.1} parent=5 // pred_check
        _
      $region10: #{tpu_custom_call.1} parent=5 // pred_check_branch
        %178 = sbr.rel (%p175) target = $region12
      $region11: #{tpu_custom_call.1} parent=5 // pred_region
        %s179 = ssub.s32 %s27, 1
        // Predicated region
        $region13: #{tpu_custom_call.1} parent=11 // pred_check
          %p180 = pneg %p93
        $region14: #{tpu_custom_call.1} parent=11 // pred_check_branch
          %182 = sbr.rel (%p180) target = $region16
        $region15: #{tpu_custom_call.1} parent=11 // pred_region
          _
        $region16: #{tpu_custom_call.1} parent=11 // pred_fallthru
          _
        // Predicated region
        $region17: #{tpu_custom_call.1} parent=11 // pred_check
          %p183 = pneg %p114
        $region18: #{tpu_custom_call.1} parent=11 // pred_check_branch
          %185 = sbr.rel (%p183) target = $region20
        $region19: #{tpu_custom_call.1} parent=11 // pred_region
          %s187 = ssub.s32 384, 384
          %188 = vsyncadd [#allocation10], %s187
          %s189 = sshll.u32 [#allocation9], 4
          %s190 = int_to_ptr.vmem [resolvable:$true] %s189
          %195 = dma.hbm_to_vmem [thread:$0]  %s4, 384, %s190, [#allocation10], 64, 64, 4
        $region20: #{tpu_custom_call.1} parent=11 // pred_fallthru
          _
        // Predicated region
        $region21: #{tpu_custom_call.1} parent=11 // pred_check
          %p196 = pneg %p135
        $region22: #{tpu_custom_call.1} parent=11 // pred_check_branch
          %198 = sbr.rel (%p196) target = $region24
        $region23: #{tpu_custom_call.1} parent=11 // pred_region
          _
        $region24: #{tpu_custom_call.1} parent=11 // pred_fallthru
          _
      $region12: #{tpu_custom_call.1} parent=5 // pred_fallthru
        _
      %p199 = scmp.lt.s32.totalorder %s27, 3
      // Predicated region
      $region25: #{tpu_custom_call.1} parent=5 // pred_check
        %p200 = pneg %p199
      $region26: #{tpu_custom_call.1} parent=5 // pred_check_branch
        %202 = sbr.rel (%p200) target = $region28
      $region27: #{tpu_custom_call.1} parent=5 // pred_region
        // Predicated region
        $region29: #{tpu_custom_call.1} parent=27 // pred_check
          %p203 = pneg %p66
        $region30: #{tpu_custom_call.1} parent=27 // pred_check_branch
          %205 = sbr.rel (%p203) target = $region32
        $region31: #{tpu_custom_call.1} parent=27 // pred_region
          %s206 = sand.u32 %s56, 1
          %s207 = scalar_lea.sflag [#allocation7], %s206
          %s208 = sand.u32 %s56, 1
          %s209 = smul.addr %s208, 16
          %s210 = scalar_lea.vmem [#allocation6], %s209
          %s212 = ssub.s32 256, 256
          %213 = vsyncadd %s207, %s212
          %s214 = smul.addr %s35, 2
          %s215 = smul.addr %s214, 128
          %s216 = scalar_lea.hbm %s2, %s215
          %s217 = sshll.u32 %s210, 4
          %s218 = int_to_ptr.vmem [resolvable:$true] %s217
          %223 = dma.hbm_to_vmem [thread:$0]  %s216, 256, %s218, %s207, 128, 128, 8
        $region32: #{tpu_custom_call.1} parent=27 // pred_fallthru
          _
      $region28: #{tpu_custom_call.1} parent=5 // pred_fallthru
        _
      %p224 = scmp.le.s32.totalorder 1, %s27
      %p225 = scmp.lt.s32.totalorder %s27, 4
      %p226 = pnand %p224, %p225
      %p227 = pneg %p226
      // Predicated region
      $region33: #{tpu_custom_call.1} parent=5 // pred_check
        _
      $region34: #{tpu_custom_call.1} parent=5 // pred_check_branch
        %229 = sbr.rel (%p226) target = $region36
      $region35: #{tpu_custom_call.1} parent=5 // pred_region
        %s230 = ssub.s32 %s27, 1
        %s231 = sand.u32 %s59, 1
        %s232 = scalar_lea.sflag [#allocation7], %s231
        %s233 = sand.u32 %s59, 1
        %s234 = smul.addr %s233, 16
        %s235 = scalar_lea.vmem [#allocation6], %s234
        // Predicated region
        $region37: #{tpu_custom_call.1} parent=35 // pred_check
          %p236 = pneg %p72
        $region38: #{tpu_custom_call.1} parent=35 // pred_check_branch
          %238 = sbr.rel (%p236) target = $region40
        $region39: #{tpu_custom_call.1} parent=35 // pred_region
          %239 = dma.done %s232, 256
        $region40: #{tpu_custom_call.1} parent=35 // pred_fallthru
          _
        // Predicated region
        $region41: #{tpu_custom_call.1} parent=35 // pred_check
          %p240 = pneg %p114
        $region42: #{tpu_custom_call.1} parent=35 // pred_check_branch
          %242 = sbr.rel (%p240) target = $region44
        $region43: #{tpu_custom_call.1} parent=35 // pred_region
          %243 = dma.done [#allocation10], 384
        $region44: #{tpu_custom_call.1} parent=35 // pred_fallthru
          _
        %s244 = sand.u32 %s59, 1
        %s245 = scalar_lea.sflag [#allocation7], %s244
        %s246 = sand.u32 %s59, 1
        %s247 = smul.addr %s246, 16
        %s248 = scalar_lea.vmem [#allocation6], %s247
        %p249 = pneg %p72
        %p250 = pneg %p69
        %p251 = pneg %p93
        %p252 = pneg %p90
        %p253 = pneg %p114
        %p254 = pneg %p111
        %p255 = pneg %p135
        %p256 = pneg %p132
        %p257 = pneg %p165
        %p258 = pneg %p162
        %s259 = sand.u32 %s152, 1
        %s260 = scalar_lea.sflag [#allocation8], %s259
        %s261 = sand.u32 %s152, 1
        %s262 = smul.addr %s261, 16
        %s263 = scalar_lea.vmem [#allocation11], %s262
        %s264 = sadd.s32 %s37, %s39
        %s265 = smul.u32 2, %s264
        %p267 = scmp.eq.s32.totalorder %s39, 0
        // Predicated region
        $region45: #{tpu_custom_call.1} parent=35 // pred_check
          %p268 = pneg %p267
        $region46: #{tpu_custom_call.1} parent=35 // pred_check_branch
          %270 = sbr.rel (%p268) target = $region48
        $region47: #{tpu_custom_call.1} parent=35 // pred_region
          %v271 = vld [vmem:[%s235] sm:$0xff]
          %v272 = vld [vmem:[%s235 + $0x8] sm:$0xff]
          %v273 = vpack.c.bf16 %v272, %v271
          %vm274 = vcmask 392192
          %275 = vst.msk [vmem:[#allocation2] sm:$0xff] %vm274, %v273
        $region48: #{tpu_custom_call.1} parent=35 // pred_fallthru
          _
        %s276 = sadd.s32 %s37, %s39
        %s277 = smul.u32 %s276, 16
        %s278 = sshra.s32 %s277, 3
        %s279 = sand.u32 %s277, 7
        %s280 = smul.addr %s278, 4
        %s281 = scalar_lea.vmem %s3, %s280
        %v282 = vld [vmem:[%s281] sm:$0xf]
        %v283 = vld [vmem:[%s281 + $0x4] sm:$0xf]
        %v284 = vld [vmem:[#allocation2] sm:$0xff]
        %v287 = vunpack.c.l.b16 %v282
        %v288 = vunpack.c.l.b16 %v283
        %v289 = vpack.c.b16 %v288, %v287
        %vm290 = vcmask 130048
        %v292 = vsel %vm290, %v289, 0
        %294 = vmatprep.subr.bf16.mxu0 0
        %295 = vmatpush1.bf16.msra.mxu0 %v284
        %296 = vmatprep.subr.bf16.mxu0 0
        %297 = vmatpush1.bf16.msra.mxu0 0
        %298 = vmatprep.subr.bf16.mxu0 0
        %299 = vmatpush1.bf16.msra.mxu0 0
        %300 = vmatprep.subr.bf16.mxu0 0
        %301 = vmatpush1.bf16.msra.mxu0 0
        %302 = vmatprep.subr.bf16.mxu0 0
        %303 = vmatpush1.bf16.msra.mxu0 0
        %304 = vmatprep.subr.bf16.mxu0 0
        %305 = vmatpush1.bf16.msra.mxu0 0
        %306 = vmatprep.subr.bf16.mxu0 0
        %307 = vmatpush1.bf16.msra.mxu0 0
        %308 = vmatprep.subr.bf16.mxu0 0
        %309 = vmatpush1.bf16.msra.mxu0 0
        %310 = vmatprep.subr.bf16.mxu0 0
        %311 = vmatpush1.bf16.msra.mxu0 0
        %312 = vmatprep.subr.bf16.mxu0 0
        %313 = vmatpush1.bf16.msra.mxu0 0
        %314 = vmatprep.subr.bf16.mxu0 0
        %315 = vmatpush1.bf16.msra.mxu0 0
        %316 = vmatprep.subr.bf16.mxu0 0
        %317 = vmatpush1.bf16.msra.mxu0 0
        %318 = vmatprep.subr.bf16.mxu0 0
        %319 = vmatpush1.bf16.msra.mxu0 0
        %320 = vmatprep.subr.bf16.mxu0 0
        %321 = vmatpush1.bf16.msra.mxu0 0
        %322 = vmatprep.subr.bf16.mxu0 0
        %323 = vmatpush1.bf16.msra.mxu0 0
        %324 = vmatprep.subr.bf16.mxu0 0
        %325 = vmatpush1.bf16.msra.mxu0 0
        %326 = vmatprep.mubr.bf16.mxu0 0
        %327 = vmatmul.mubr.bf16.gmra.mrb[0].mxu0 %v292
        %v328 = vpop.f32.mrb[0].mxu0
        %v329 = vadd.f32 0.0, %v328
        %v330 = vpop.f32.mrb[0].mxu0
        %v331 = vpop.f32.mrb[0].mxu0
        %v332 = vadd.f32 0.0, %v331
        %v333 = vpop.f32.mrb[0].mxu0
        %334 = vdwg.mxu0
        %v335 = vpack.c.bf16 %v332, %v329
        %v336 = vld [vmem:[#allocation9] sm:$0xf]
        %v337 = vld [vmem:[#allocation9 + $0x4] sm:$0xf]
        %v338 = vld [vmem:[#allocation9 + $0x8] sm:$0xf]
        %v339 = vld [vmem:[#allocation9 + $0xc] sm:$0xf]
        %v340 = vld [vmem:[#allocation9 + $0x10] sm:$0xf]
        %v341 = vld [vmem:[#allocation9 + $0x14] sm:$0xf]
        %v342 = vlaneseq
        %v343 = vshrl.u32 %v342, 7
        %v344 = vadd.s32 %v343, 8
        %v345 = vstv %s277
        %v346 = vadd.s32 %v345, %v343
        %v347 = vadd.s32 %v345, %v344
        %vm348 = vcmp.lt.s32.totalorder %v346, 14
        %vm349 = vcmp.lt.s32.totalorder %v347, 14
        %v350 = vsel %vm348, 0.0, 114.0
        %v351 = vsel %vm349, 0.0, 114.0
        %v352 = vld [vmem:[%s5] sm:$0x1]
        %v354 = vlaneseq
        %v355 = vshrl.u32 %v354, 7
        %v356 = vsub.s32 0, %v355
        %v357 = vrot.slane %v352, %v356
        %v359 = vmax.f32 %v350, %v357
        %v360 = vmax.f32 %v351, %v357
        %v367 = vunpack.c.l.b16 %v336
        %v368 = vunpack.c.l.b16 %v337
        %v369 = vunpack.c.l.b16 %v338
        %v370 = vunpack.c.l.b16 %v339
        %v371 = vunpack.c.l.b16 %v340
        %v372 = vunpack.c.l.b16 %v341
        %v373 = vpack.c.b16 %v368, %v367
        %v374 = vpack.c.b16 %v370, %v369
        %v375 = vpack.c.b16 %v372, %v371
        %vm379 = vcmask 392192
        %v381 = vsel %vm379, %v335, 0
        %383 = vmatprep.subr.bf16.mxu0 0
        %384 = vmatpush1.bf16.msra.mxu0 %v373
        %385 = vmatprep.subr.bf16.mxu0 0
        %386 = vmatpush1.bf16.msra.mxu0 %v374
        %387 = vmatprep.subr.bf16.mxu0 0
        %388 = vmatpush1.bf16.msra.mxu0 %v375
        %389 = vmatprep.subr.bf16.mxu0 0
        %390 = vmatpush1.bf16.msra.mxu0 0
        %391 = vmatprep.subr.bf16.mxu0 0
        %392 = vmatpush1.bf16.msra.mxu0 0
        %393 = vmatprep.subr.bf16.mxu0 0
        %394 = vmatpush1.bf16.msra.mxu0 0
        %395 = vmatprep.subr.bf16.mxu0 0
        %396 = vmatpush1.bf16.msra.mxu0 0
        %397 = vmatprep.subr.bf16.mxu0 0
        %398 = vmatpush1.bf16.msra.mxu0 0
        %399 = vmatprep.subr.bf16.mxu0 0
        %400 = vmatpush1.bf16.msra.mxu0 0
        %401 = vmatprep.subr.bf16.mxu0 0
        %402 = vmatpush1.bf16.msra.mxu0 0
        %403 = vmatprep.subr.bf16.mxu0 0
        %404 = vmatpush1.bf16.msra.mxu0 0
        %405 = vmatprep.subr.bf16.mxu0 0
        %406 = vmatpush1.bf16.msra.mxu0 0
        %407 = vmatprep.subr.bf16.mxu0 0
        %408 = vmatpush1.bf16.msra.mxu0 0
        %409 = vmatprep.subr.bf16.mxu0 0
        %410 = vmatpush1.bf16.msra.mxu0 0
        %411 = vmatprep.subr.bf16.mxu0 0
        %412 = vmatpush1.bf16.msra.mxu0 0
        %413 = vmatprep.subr.bf16.mxu0 0
        %414 = vmatpush1.bf16.msra.mxu0 0
        %415 = vmatprep.mubr.bf16.mxu0 0
        %416 = vmatmul.mubr.bf16.gmra.mrb[0].mxu0 %v381
        %v417 = vpop.f32.mrb[0].mxu0
        %v418 = vadd.f32 %v359, %v417
        %v419 = vpop.f32.mrb[0].mxu0
        %v420 = vpop.f32.mrb[0].mxu0
        %v421 = vadd.f32 %v360, %v420
        %v422 = vpop.f32.mrb[0].mxu0
        %423 = vdwg.mxu0
        %s424 = sld [smem:[#allocation4 + %s38]]
        %v425 = vstv %s424
        %v426 = vmul.f32 %v418, %v425
        %v427 = vmul.f32 %v421, %v425
        %s428 = sld [smem:[#allocation5 + %s38]]
        %v429 = vstv %s428
        %v430 = vadd.f32 %v426, %v429
        %v431 = vadd.f32 %v427, %v429
        %432 = vst [vmem:[%s263] sm:$0xff] %v430
        %433 = vst [vmem:[%s263 + $0x8] sm:$0xff] %v431
        %s434 = sand.u32 %s152, 1
        %s435 = scalar_lea.sflag [#allocation8], %s434
        %s436 = sand.u32 %s152, 1
        %s437 = smul.addr %s436, 16
        %s438 = scalar_lea.vmem [#allocation11], %s437
        // Predicated region
        $region49: #{tpu_custom_call.1} parent=35 // pred_check
          %p439 = pneg %p162
        $region50: #{tpu_custom_call.1} parent=35 // pred_check_branch
          %441 = sbr.rel (%p439) target = $region52
        $region51: #{tpu_custom_call.1} parent=35 // pred_region
          %s442 = sadd.s32 %s37, %s39
          %s443 = smul.u32 2, %s442
          %s445 = ssub.s32 256, 256
          %446 = vsyncadd %s435, %s445
          %s447 = smul.addr %s38, 2
          %s448 = sadd.s32 %s443, %s447
          %s449 = smul.addr %s448, 128
          %s450 = scalar_lea.hbm %s6, %s449
          %s451 = sshll.u32 %s438, 4
          %s452 = int_to_ptr.vmem [resolvable:$true] %s451
          %457 = dma.vmem_to_hbm [thread:$0]  %s452, 256, %s450, %s435, 128, 128, 8
        $region52: #{tpu_custom_call.1} parent=35 // pred_fallthru
          _
      $region36: #{tpu_custom_call.1} parent=5 // pred_fallthru
        _
      %p458 = scmp.le.s32.totalorder 2, %s27
      // Predicated region
      $region53: #{tpu_custom_call.1} parent=5 // pred_check
        %p459 = pneg %p458
      $region54: #{tpu_custom_call.1} parent=5 // pred_check_branch
        %461 = sbr.rel (%p459) target = $region56
      $region55: #{tpu_custom_call.1} parent=5 // pred_region
        %s462 = ssub.s32 %s27, 2
        // Predicated region
        $region57: #{tpu_custom_call.1} parent=55 // pred_check
          %p463 = pneg %p168
        $region58: #{tpu_custom_call.1} parent=55 // pred_check_branch
          %465 = sbr.rel (%p463) target = $region60
        $region59: #{tpu_custom_call.1} parent=55 // pred_region
          %s466 = sand.u32 %s153, 1
          %s467 = scalar_lea.sflag [#allocation8], %s466
          %s468 = sand.u32 %s153, 1
          %s469 = smul.addr %s468, 16
          %s470 = scalar_lea.vmem [#allocation11], %s469
          %471 = dma.done %s467, 256
        $region60: #{tpu_custom_call.1} parent=55 // pred_fallthru
          _
      $region56: #{tpu_custom_call.1} parent=5 // pred_fallthru
        _
    $region6: #{tpu_custom_call.1} parent=1 // loop_footer
      %s31 = sadd.s32 1, %s27
    $region7: #{tpu_custom_call.1} parent=1 // loop_footer_branch
      %26 = sbr.rel target = $region3
    $region8: #{tpu_custom_call.1} parent=1 // loop_exit
      _
    %472 = vsyncpa [#allocation7], 1
    %s473 = scalar_lea.sflag [#allocation7], 1
    %474 = vsyncpa %s473, 1
    %475 = vsyncpa [#allocation10], 1
    %476 = vsyncpa [#allocation8], 1
    %s477 = scalar_lea.sflag [#allocation8], 1
    %478 = vsyncpa %s477, 1

</llo_original>
